<compile_context>
chip_gen: v6e
topology: v6e:2x2x1
jax: 0.10.0
libtpu: 0.0.40
codegen_flags: <defaults>
</compile_context>

<pallas_src>
import jax
import jax.numpy as jnp
from jax.experimental import pallas as pl
from jax.experimental.pallas import tpu as pltpu

_LANE = 128


def _round_up(x, m):
    return ((x + m - 1) // m) * m


def _make_mlp_kernel(num_hidden):
    """Kernel factory: `num_hidden` (Linear+ReLU) layers then a 1-wide projection."""

    def kernel(*refs):
        x_ref = refs[0]                          # (TB, D) streamed batch tile
        o_ref = refs[-1]                         # (1, 1, TB) lane-dense output tile
        b_out_ref = refs[-2]                     # (1,) f32 scalar in SMEM
        w_out_ref = refs[-3]                     # (1, H_pad) f32, VMEM-resident
        wb = refs[1:-3]                          # w1, b1, ..., wL, bL (VMEM-resident)

        h = x_ref[...]                           # (TB, D), already in compute dtype if pre-cast
        for l in range(num_hidden):
            w = wb[2 * l][...]                   # (prev_pad, h_pad) pre-cast to compute_dtype
            b = wb[2 * l + 1][...]               # (1, h_pad) f32
            if h.dtype != w.dtype:               # only the f32 activations get cast in-kernel
                h = h.astype(w.dtype)
            h = jnp.dot(h, w, preferred_element_type=jnp.float32)
            h = jnp.maximum(h + b, 0.0)          # bias + ReLU kept in f32 (v5e has no bf16 VPU)

        # N=1 projection: VPU multiply + XLU lane reduce; stored lane-dense
        # (batch rows packed onto the lane axis of the (1, 1, TB) block).
        out = jnp.sum(h * w_out_ref[...], axis=-1)        # (TB,)
        o_ref[...] = out[None, None, :] + b_out_ref[0]    # (1, 1, TB)

    return kernel


def mlp_forward(x, params, *, hidden_dims, block_rows=2048,
                compute_dtype=jnp.float32):
    """x: (B, input_dim); params: transposed weights w{i}: (in, out), biases b{i}: (1, out).

    For best HBM efficiency on v6e/v7x pass compute_dtype=jnp.bfloat16 and x already in bf16.
    """
    B, D = x.shape
    num_hidden = len(hidden_dims)

    # ---- Zero-pad hidden dims to multiples of 128 (full-width vregs / MXU tiles);
    # pre-cast matmul weights to compute_dtype once, in the wrapper.
    padded_dims = [D] + [_round_up(h, _LANE) for h in hidden_dims]
    ws, bs = [], []
    prev_pad = D
    for l in range(num_hidden):
        h_pad = padded_dims[l + 1]
        w = params[f"w{l + 1}"]                          # (prev, h)
        b = params[f"b{l + 1}"]                          # (1, h)
        ws.append(jnp.pad(w, ((0, prev_pad - w.shape[0]),
                              (0, h_pad - w.shape[1]))).astype(compute_dtype))
        bs.append(jnp.pad(b, ((0, 0), (0, h_pad - b.shape[1]))).astype(jnp.float32))
        prev_pad = h_pad
    w_out = params[f"w{num_hidden + 1}"]                 # (prev, 1)
    b_out = params[f"b{num_hidden + 1}"]                 # (1, 1)
    w_out_row = jnp.pad(w_out[:, 0][None, :],
                        ((0, 0), (0, prev_pad - w_out.shape[0]))).astype(jnp.float32)
    b_out_s = b_out.reshape((1,)).astype(jnp.float32)    # SMEM scalar

    # ---- Batch tiling: large lane-dense tiles amortize per-grid-step overhead.
    TB = min(_round_up(block_rows, _LANE), _round_up(B, _LANE))
    num_tiles = pl.cdiv(B, TB)
    if B < TB:
        # Tiny batches only (single tile): cheap pad. Large B uses Pallas edge-block
        # handling for the last partial tile instead of a full-array host-side pad.
        x = jnp.pad(x, ((0, TB - B), (0, 0)))

    kernel = _make_mlp_kernel(num_hidden)

    def const_spec(shape):
        zeros = (0,) * len(shape)
        return pl.BlockSpec(shape, lambda i, _z=zeros: _z)   # weights stay VMEM-resident

    in_specs = [pl.BlockSpec((TB, D), lambda i: (i, 0))]      # only x is streamed
    flat_params = []
    for w, b in zip(ws, bs):
        in_specs += [const_spec(w.shape), const_spec(b.shape)]
        flat_params += [w, b]
    in_specs += [const_spec(w_out_row.shape),
                 pl.BlockSpec(memory_space=pltpu.MemorySpace.SMEM)]
    flat_params += [w_out_row, b_out_s]

    # Lane-dense output: (num_tiles, 1, TB), one (1, 1, TB) block per grid step.
    out_specs = pl.BlockSpec((1, 1, TB), lambda i: (i, 0, 0))

    rows = num_tiles * TB
    flops = 2 * rows * sum(a * b for a, b in zip(padded_dims[:-1], padded_dims[1:]))
    flops += 2 * rows * padded_dims[-1]                       # final projection
    bytes_accessed = (x.size * x.dtype.itemsize
                      + sum(a.size * a.dtype.itemsize for a in flat_params)
                      + rows * 4)

    out = pl.pallas_call(
        kernel,
        out_shape=jax.ShapeDtypeStruct((num_tiles, 1, TB), jnp.float32),
        grid=(num_tiles,),
        in_specs=in_specs,
        out_specs=out_specs,
        compiler_params=pltpu.CompilerParams(
            dimension_semantics=("parallel",)),               # batch steps are independent
        cost_estimate=pl.CostEstimate(flops=flops, transcendentals=0,
                                      bytes_accessed=bytes_accessed),
    )(x, *flat_params)

    return out.reshape(rows, 1)[:B]


def init_params(key, input_dim, hidden_dims):
    """Deterministic init matching nn.Linear shapes (stored transposed: (in, out))."""
    dims = [input_dim] + list(hidden_dims) + [1]
    params = {}
    keys = jax.random.split(key, 2 * (len(dims) - 1))
    for i in range(len(dims) - 1):
        fan_in, fan_out = dims[i], dims[i + 1]
        bound = 1.0 / jnp.sqrt(fan_in)
        w = jax.random.uniform(keys[2 * i], (fan_in, fan_out),
                               minval=-bound, maxval=bound, dtype=jnp.float32)
        b = jax.random.uniform(keys[2 * i + 1], (1, fan_out),
                               minval=-bound, maxval=bound, dtype=jnp.float32)
        params[f"w{i + 1}"] = w
        params[f"b{i + 1}"] = b
    return params


def mlp_ref(x, params, hidden_dims):
    h = x
    for l in range(len(hidden_dims)):
        h = jnp.maximum(h @ params[f"w{l + 1}"] + params[f"b{l + 1}"], 0.0)
    n = len(hidden_dims)
    return h @ params[f"w{n + 1}"] + params[f"b{n + 1}"]


if __name__ == "__main__":
    key = jax.random.PRNGKey(0)
    kx, kp = jax.random.split(key)

    batch, input_dim = 8, 32
    hidden_dims = (64, 32)   # MLP(input_dim=32, hidden_dims=[64, 32], dropout=0.1), eval mode

    x = jax.random.normal(kx, (batch, input_dim), dtype=jnp.float32)
    params = init_params(kp, input_dim, hidden_dims)

    out = jax.block_until_ready(mlp_forward(x, params, hidden_dims=hidden_dims))
    ref = mlp_ref(x, params, hidden_dims)
    assert out.shape == (batch, 1)
    assert jnp.allclose(out, ref, atol=1e-4, rtol=1e-4)

    # Multi-tile path with a partial last tile (B not a multiple of TB, no host-side pad of x).
    big_B = 1000
    xb = jax.random.normal(jax.random.PRNGKey(1), (big_B, input_dim), dtype=jnp.float32)
    ref_b = mlp_ref(xb, params, hidden_dims)
    out_b = jax.block_until_ready(
        mlp_forward(xb, params, hidden_dims=hidden_dims, block_rows=256))
    assert out_b.shape == (big_B, 1)
    assert jnp.allclose(out_b, ref_b, atol=1e-4, rtol=1e-4)

    # bf16 MXU path (recommended on v6e/v7x): weights pre-cast in the wrapper, x streamed as bf16.
    out_bf = jax.block_until_ready(
        mlp_forward(xb.astype(jnp.bfloat16), params, hidden_dims=hidden_dims,
                    compute_dtype=jnp.bfloat16))
    assert out_bf.shape == (big_B, 1)
    assert jnp.allclose(out_bf, ref_b, atol=5e-2, rtol=5e-2)

    print("KERNEL_OK")
</pallas_src>

<mosaic_0001>
module attributes {stable_mosaic.version = 11 : i64} {
  func.func @kernel(%arg0: i32, %arg1: memref<128x32xf32, #tpu.memory_space<vmem>>, %arg2: memref<32x128xf32, #tpu.memory_space<vmem>>, %arg3: memref<1x128xf32, #tpu.memory_space<vmem>>, %arg4: memref<128x128xf32, #tpu.memory_space<vmem>>, %arg5: memref<1x128xf32, #tpu.memory_space<vmem>>, %arg6: memref<1x128xf32, #tpu.memory_space<vmem>>, %arg7: memref<1xf32, #tpu.memory_space<smem>>, %arg8: memref<1x1x128xf32, #tpu.memory_space<vmem>>) attributes {dimension_semantics = [#tpu.dimension_semantics<parallel>], iteration_bounds = array<i64: 1>, scalar_prefetch = 0 : i64, scratch_operands = 0 : i64, tpu.core_type = #tpu.core_type<tc>, window_params = [{transform_indices = @transform_0, window_bounds = array<i64: 128, 32>}, {pipeline_mode = #tpu.pipeline_mode<synchronous>, transform_indices = @transform_1, window_bounds = array<i64: 32, 128>}, {pipeline_mode = #tpu.pipeline_mode<synchronous>, transform_indices = @transform_2, window_bounds = array<i64: 1, 128>}, {pipeline_mode = #tpu.pipeline_mode<synchronous>, transform_indices = @transform_3, window_bounds = array<i64: 128, 128>}, {pipeline_mode = #tpu.pipeline_mode<synchronous>, transform_indices = @transform_4, window_bounds = array<i64: 1, 128>}, {pipeline_mode = #tpu.pipeline_mode<synchronous>, transform_indices = @transform_5, window_bounds = array<i64: 1, 128>}, {transform_indices = @transform_6, window_bounds = array<i64: 1>}, {transform_indices = @transform_7, window_bounds = array<i64: 1, 1, 128>}]} {
    %c0 = arith.constant 0 : index
    %c0_0 = arith.constant 0 : index
    %0 = vector.load %arg1[%c0, %c0_0] : memref<128x32xf32, #tpu.memory_space<vmem>>, vector<128x32xf32>
    %c0_1 = arith.constant 0 : index
    %c0_2 = arith.constant 0 : index
    %1 = vector.load %arg2[%c0_1, %c0_2] : memref<32x128xf32, #tpu.memory_space<vmem>>, vector<32x128xf32>
    %c0_3 = arith.constant 0 : index
    %c0_4 = arith.constant 0 : index
    %2 = vector.load %arg3[%c0_3, %c0_4] : memref<1x128xf32, #tpu.memory_space<vmem>>, vector<1x128xf32>
    %cst = arith.constant dense<0.000000e+00> : vector<128x128xf32>
    %3 = tpu.matmul %0, %1, %cst {dimension_numbers = #tpu.dot_dimension_numbers<[1], [0], [0], [1], [0, 0, 1, 1], [], []>} : vector<128x32xf32>, vector<32x128xf32>, vector<128x128xf32> -> vector<128x128xf32>
    %4 = vector.broadcast %2 : vector<1x128xf32> to vector<128x128xf32>
    %5 = arith.addf %3, %4 : vector<128x128xf32>
    %cst_5 = arith.constant 0.000000e+00 : f32
    %6 = vector.broadcast %cst_5 : f32 to vector<128x128xf32>
    %7 = arith.maximumf %5, %6 : vector<128x128xf32>
    %c0_6 = arith.constant 0 : index
    %c0_7 = arith.constant 0 : index
    %8 = vector.load %arg4[%c0_6, %c0_7] : memref<128x128xf32, #tpu.memory_space<vmem>>, vector<128x128xf32>
    %c0_8 = arith.constant 0 : index
    %c0_9 = arith.constant 0 : index
    %9 = vector.load %arg5[%c0_8, %c0_9] : memref<1x128xf32, #tpu.memory_space<vmem>>, vector<1x128xf32>
    %cst_10 = arith.constant dense<0.000000e+00> : vector<128x128xf32>
    %10 = tpu.matmul %7, %8, %cst_10 {dimension_numbers = #tpu.dot_dimension_numbers<[1], [0], [0], [1], [0, 0, 1, 1], [], []>} : vector<128x128xf32>, vector<128x128xf32>, vector<128x128xf32> -> vector<128x128xf32>
    %11 = vector.broadcast %9 : vector<1x128xf32> to vector<128x128xf32>
    %12 = arith.addf %10, %11 : vector<128x128xf32>
    %cst_11 = arith.constant 0.000000e+00 : f32
    %13 = vector.broadcast %cst_11 : f32 to vector<128x128xf32>
    %14 = arith.maximumf %12, %13 : vector<128x128xf32>
    %c0_12 = arith.constant 0 : index
    %c0_13 = arith.constant 0 : index
    %15 = vector.load %arg6[%c0_12, %c0_13] : memref<1x128xf32, #tpu.memory_space<vmem>>, vector<1x128xf32>
    %16 = vector.broadcast %15 : vector<1x128xf32> to vector<128x128xf32>
    %17 = arith.mulf %14, %16 : vector<128x128xf32>
    %cst_14 = arith.constant dense<0.000000e+00> : vector<128xf32>
    %18 = vector.multi_reduction <add>, %17, %cst_14 [1] : vector<128x128xf32> to vector<128xf32>
    %19 = vector.shape_cast %18 : vector<128xf32> to vector<1x1x128xf32>
    %c0_15 = arith.constant 0 : index
    %20 = memref.load %arg7[%c0_15] : memref<1xf32, #tpu.memory_space<smem>>
    %21 = vector.broadcast %20 : f32 to vector<1x1x128xf32>
    %22 = arith.addf %19, %21 : vector<1x1x128xf32>
    %c0_16 = arith.constant 0 : index
    %c0_17 = arith.constant 0 : index
    %c0_18 = arith.constant 0 : index
    %23 = vector.load %arg8[%c0_16, %c0_17, %c0_18] : memref<1x1x128xf32, #tpu.memory_space<vmem>>, vector<1x1x128xf32>
    tpu.vector_store %arg8[%c0_16, %c0_17, %c0_18], %22 {strides = array<i32>} : memref<1x1x128xf32, #tpu.memory_space<vmem>>, vector<1x1x128xf32>,
    return
  }
  func.func @transform_0(%arg0: i32) -> (i32, i32) {
    %c0_i32 = arith.constant 0 : i32
    %c0_i32_0 = arith.constant 0 : i32
    return %arg0, %c0_i32 : i32, i32
  }
  func.func @transform_1(%arg0: i32) -> (i32, i32) {
    %c0_i32 = arith.constant 0 : i32
    %c0_i32_0 = arith.constant 0 : i32
    %c0_i32_1 = arith.constant 0 : i32
    return %c0_i32, %c0_i32_0 : i32, i32
  }
  func.func @transform_2(%arg0: i32) -> (i32, i32) {
    %c0_i32 = arith.constant 0 : i32
    %c0_i32_0 = arith.constant 0 : i32
    %c0_i32_1 = arith.constant 0 : i32
    return %c0_i32, %c0_i32_0 : i32, i32
  }
  func.func @transform_3(%arg0: i32) -> (i32, i32) {
    %c0_i32 = arith.constant 0 : i32
    %c0_i32_0 = arith.constant 0 : i32
    %c0_i32_1 = arith.constant 0 : i32
    return %c0_i32, %c0_i32_0 : i32, i32
  }
  func.func @transform_4(%arg0: i32) -> (i32, i32) {
    %c0_i32 = arith.constant 0 : i32
    %c0_i32_0 = arith.constant 0 : i32
    %c0_i32_1 = arith.constant 0 : i32
    return %c0_i32, %c0_i32_0 : i32, i32
  }
  func.func @transform_5(%arg0: i32) -> (i32, i32) {
    %c0_i32 = arith.constant 0 : i32
    %c0_i32_0 = arith.constant 0 : i32
    %c0_i32_1 = arith.constant 0 : i32
    return %c0_i32, %c0_i32_0 : i32, i32
  }
  func.func @transform_6(%arg0: i32) -> i32 {
    %c0_i32 = arith.constant 0 : i32
    %c0_i32_0 = arith.constant 0 : i32
    return %c0_i32 : i32
  }
  func.func @transform_7(%arg0: i32) -> (i32, i32, i32) {
    %c0_i32 = arith.constant 0 : i32
    %c0_i32_0 = arith.constant 0 : i32
    %c0_i32_1 = arith.constant 0 : i32
    return %arg0, %c0_i32, %c0_i32_0 : i32, i32, i32
  }
}

</mosaic_0001>

<llo_original>
// kernel: tpu_custom_call.1
$region0: #{tpu_custom_call.1}
  #allocation0 [shape = 'u32[]', space=smem, size = 0x4, offset = 0x4, fixed_abs, tag = 'smem constant byte address 0x4 - core index']
  #allocation1 [shape = 'u32[144,128]{1,0:T(1,128)}', space=vmem, size = 0x12000, scoped, tag = 'internal scratch']
  #allocation2 [shape = 'f32[1]{0:T(128)S(6)}', space=smem, size = 0x200, scoped, tag = 'scoped memory for tpu_custom_call.1']
  %s0 = inlined_call_operand.vmem [shape: f32[128,32], index: 0, kind: input, shape index: {}]
  %s1 = inlined_call_operand.vmem [shape: f32[32,128], index: 1, kind: input, shape index: {}]
  %s2 = inlined_call_operand.vmem [shape: f32[1,128], index: 2, kind: input, shape index: {}]
  %s3 = inlined_call_operand.vmem [shape: f32[128,128], index: 3, kind: input, shape index: {}]
  %s4 = inlined_call_operand.vmem [shape: f32[1,128], index: 4, kind: input, shape index: {}]
  %s5 = inlined_call_operand.vmem [shape: f32[1,128], index: 5, kind: input, shape index: {}]
  %s6 = inlined_call_operand.<no memory space> [shape: f32[1], index: 6, kind: input, shape index: {}]
  %s7 = inlined_call_operand.hbm [shape: f32[1,1,128], index: 7, kind: output, shape index: {}]
  %s8 = sld [smem:[#allocation0]]
  $region38: #{tpu_custom_call.1} parent=0
    _
  %s10 = ssub.s32 1, %s8
  %s11 = scalar_select 0, %s10, %s8
  %12 = sst [smem:[#allocation2]] %s6
  $region1: #{tpu_custom_call.1} parent=0
    #allocation3 [shape = 'u8[512]{0}', space=vmem, size = 0x400, scoped, tag = 'output window, operand 0, single buffered']
    #allocation4 [shape = 's32[1]{0}', space=sflag, size = 0x4, scoped, tag = 'scoped memory for tpu_custom_call.1']
    %13 = vsyncpa [#allocation4], 0
    // Predicated region
    $region2: #{tpu_custom_call.1} parent=1 // pred_check
      _
    $region3: #{tpu_custom_call.1} parent=1 // pred_check_branch
      %15 = sbr.rel (0) target = $region5
    $region4: #{tpu_custom_call.1} parent=1 // pred_region
      _
    $region5: #{tpu_custom_call.1} parent=1 // pred_fallthru
      _
    // Predicated region
    $region6: #{tpu_custom_call.1} parent=1 // pred_check
      _
    $region7: #{tpu_custom_call.1} parent=1 // pred_check_branch
      %17 = sbr.rel (0) target = $region9
    $region8: #{tpu_custom_call.1} parent=1 // pred_region
      _
    $region9: #{tpu_custom_call.1} parent=1 // pred_fallthru
      _
    // Predicated region
    $region10: #{tpu_custom_call.1} parent=1 // pred_check
      _
    $region11: #{tpu_custom_call.1} parent=1 // pred_check_branch
      %19 = sbr.rel (0) target = $region13
    $region12: #{tpu_custom_call.1} parent=1 // pred_region
      _
    $region13: #{tpu_custom_call.1} parent=1 // pred_fallthru
      _
    // Predicated region
    $region14: #{tpu_custom_call.1} parent=1 // pred_check
      _
    $region15: #{tpu_custom_call.1} parent=1 // pred_check_branch
      %21 = sbr.rel (0) target = $region17
    $region16: #{tpu_custom_call.1} parent=1 // pred_region
      _
    $region17: #{tpu_custom_call.1} parent=1 // pred_fallthru
      _
    // Predicated region
    $region18: #{tpu_custom_call.1} parent=1 // pred_check
      _
    $region19: #{tpu_custom_call.1} parent=1 // pred_check_branch
      %23 = sbr.rel (0) target = $region21
    $region20: #{tpu_custom_call.1} parent=1 // pred_region
      _
    $region21: #{tpu_custom_call.1} parent=1 // pred_fallthru
      _
    // Predicated region
    $region22: #{tpu_custom_call.1} parent=1 // pred_check
      _
    $region23: #{tpu_custom_call.1} parent=1 // pred_check_branch
      %25 = sbr.rel (0) target = $region25
    $region24: #{tpu_custom_call.1} parent=1 // pred_region
      _
    $region25: #{tpu_custom_call.1} parent=1 // pred_fallthru
      _
    // Predicated region
    $region26: #{tpu_custom_call.1} parent=1 // pred_check
      _
    $region27: #{tpu_custom_call.1} parent=1 // pred_check_branch
      %27 = sbr.rel (0) target = $region29
    $region28: #{tpu_custom_call.1} parent=1 // pred_region
      _
    $region29: #{tpu_custom_call.1} parent=1 // pred_fallthru
      _
    %v28 = vld [vmem:[%s0] sm:$0xff]
    %v29 = vld [vmem:[%s0 + $0x8] sm:$0xff]
    %v30 = vld [vmem:[%s0 + $0x10] sm:$0xff]
    %v31 = vld [vmem:[%s0 + $0x18] sm:$0xff]
    %v32 = vld [vmem:[%s0 + $0x20] sm:$0xff]
    %v33 = vld [vmem:[%s0 + $0x28] sm:$0xff]
    %v34 = vld [vmem:[%s0 + $0x30] sm:$0xff]
    %v35 = vld [vmem:[%s0 + $0x38] sm:$0xff]
    %v36 = vld [vmem:[%s0 + $0x40] sm:$0xff]
    %v37 = vld [vmem:[%s0 + $0x48] sm:$0xff]
    %v38 = vld [vmem:[%s0 + $0x50] sm:$0xff]
    %v39 = vld [vmem:[%s0 + $0x58] sm:$0xff]
    %v40 = vld [vmem:[%s0 + $0x60] sm:$0xff]
    %v41 = vld [vmem:[%s0 + $0x68] sm:$0xff]
    %v42 = vld [vmem:[%s0 + $0x70] sm:$0xff]
    %v43 = vld [vmem:[%s0 + $0x78] sm:$0xff]
    %v44 = vld [vmem:[%s1] sm:$0xff]
    %v45 = vld [vmem:[%s1 + $0x8] sm:$0xff]
    %v46 = vld [vmem:[%s1 + $0x10] sm:$0xff]
    %v47 = vld [vmem:[%s1 + $0x18] sm:$0xff]
    %v48 = vld [vmem:[%s2] sm:$0x1]
    %v50 = vlaneseq
    %v51 = vshrl.u32 %v50, 7
    %v52 = vsub.s32 0, %v51
    %v53 = vrot.slane %v48, %v52
    %vm55 = vcmask 261120
    %v57 = vsel %vm55, %v28, 0
    %v60 = vsel %vm55, %v29, 0
    %v63 = vsel %vm55, %v30, 0
    %v66 = vsel %vm55, %v31, 0
    %v69 = vsel %vm55, %v32, 0
    %v72 = vsel %vm55, %v33, 0
    %v75 = vsel %vm55, %v34, 0
    %v78 = vsel %vm55, %v35, 0
    %v81 = vsel %vm55, %v36, 0
    %v84 = vsel %vm55, %v37, 0
    %v87 = vsel %vm55, %v38, 0
    %v90 = vsel %vm55, %v39, 0
    %v93 = vsel %vm55, %v40, 0
    %v96 = vsel %vm55, %v41, 0
    %v99 = vsel %vm55, %v42, 0
    %v102 = vsel %vm55, %v43, 0
    %104 = vmatprep.subr.mxu0 0.0
    %105 = vmatpush1.msra.mxu0 0.0
    %106 = vmatprep.subr.mxu0 0.0
    %107 = vmatpush1.msra.mxu0 0.0
    %108 = vmatprep.subr.mxu0 0.0
    %109 = vmatpush1.msra.mxu0 0.0
    %110 = vmatprep.subr.mxu0 0.0
    %111 = vmatpush1.msra.mxu0 0.0
    %112 = vmatprep.subr.mxu0 0.0
    %113 = vmatpush1.msra.mxu0 0.0
    %114 = vmatprep.subr.mxu0 0.0
    %115 = vmatpush1.msra.mxu0 0.0
    %116 = vmatprep.subr.mxu0 0.0
    %117 = vmatpush1.msra.mxu0 0.0
    %118 = vmatprep.subr.mxu0 0.0
    %119 = vmatpush1.msra.mxu0 0.0
    %120 = vmatprep.subr.mxu0 0.0
    %121 = vmatpush1.msra.mxu0 0.0
    %122 = vmatprep.subr.mxu0 0.0
    %123 = vmatpush1.msra.mxu0 0.0
    %124 = vmatprep.subr.mxu0 0.0
    %125 = vmatpush1.msra.mxu0 0.0
    %126 = vmatprep.subr.mxu0 0.0
    %127 = vmatpush1.msra.mxu0 0.0
    %128 = vmatprep.subr.mxu0 0.0
    %129 = vmatpush1.msra.mxu0 %v47
    %130 = vmatprep.subr.mxu0 0.0
    %131 = vmatpush1.msra.mxu0 %v46
    %132 = vmatprep.subr.mxu0 0.0
    %133 = vmatpush1.msra.mxu0 %v45
    %134 = vmatprep.subr.mxu0 0.0
    %135 = vmatpush1.msra.mxu0 %v44
    %136 = vmatprep.subr.mxu0 0.0
    %137 = vmatpush2.msra.mxu0 0.0
    %138 = vmatprep.subr.mxu0 0.0
    %139 = vmatpush2.msra.mxu0 0.0
    %140 = vmatprep.subr.mxu0 0.0
    %141 = vmatpush2.msra.mxu0 0.0
    %142 = vmatprep.subr.mxu0 0.0
    %143 = vmatpush2.msra.mxu0 0.0
    %144 = vmatprep.subr.mxu0 0.0
    %145 = vmatpush2.msra.mxu0 0.0
    %146 = vmatprep.subr.mxu0 0.0
    %147 = vmatpush2.msra.mxu0 0.0
    %148 = vmatprep.subr.mxu0 0.0
    %149 = vmatpush2.msra.mxu0 0.0
    %150 = vmatprep.subr.mxu0 0.0
    %151 = vmatpush2.msra.mxu0 0.0
    %152 = vmatprep.subr.mxu0 0.0
    %153 = vmatpush2.msra.mxu0 0.0
    %154 = vmatprep.subr.mxu0 0.0
    %155 = vmatpush2.msra.mxu0 0.0
    %156 = vmatprep.subr.mxu0 0.0
    %157 = vmatpush2.msra.mxu0 0.0
    %158 = vmatprep.subr.mxu0 0.0
    %159 = vmatpush2.msra.mxu0 0.0
    %160 = vmatprep.subr.mxu0 0.0
    %161 = vmatpush2.msra.mxu0 0.0
    %162 = vmatprep.subr.mxu0 0.0
    %163 = vmatpush2.msra.mxu0 0.0
    %164 = vmatprep.subr.mxu0 0.0
    %165 = vmatpush2.msra.mxu0 0.0
    %166 = vmatprep.subr.mxu0 0.0
    %167 = vmatpush2.msra.mxu0 0.0
    %168 = vmatprep.mubr.f32.mxu0 0.0
    %169 = vmatmul.mubr.f32.gmra.mxu0 %v57
    %v170 = vpop.f32.mrf.mxu0
    %v171 = vadd.f32 %v53, %v170
    %v172 = vpop.f32.mrf.mxu0
    %173 = vmatprep.mubr.f32.mxu0 0.0
    %174 = vmatmul.mubr.f32.gmra.mxu0 %v60
    %v175 = vpop.f32.mrf.mxu0
    %v176 = vadd.f32 %v53, %v175
    %v177 = vpop.f32.mrf.mxu0
    %178 = vmatprep.mubr.f32.mxu0 0.0
    %179 = vmatmul.mubr.f32.gmra.mxu0 %v63
    %v180 = vpop.f32.mrf.mxu0
    %v181 = vadd.f32 %v53, %v180
    %v182 = vpop.f32.mrf.mxu0
    %183 = vmatprep.mubr.f32.mxu0 0.0
    %184 = vmatmul.mubr.f32.gmra.mxu0 %v66
    %v185 = vpop.f32.mrf.mxu0
    %v186 = vadd.f32 %v53, %v185
    %v187 = vpop.f32.mrf.mxu0
    %188 = vmatprep.mubr.f32.mxu0 0.0
    %189 = vmatmul.mubr.f32.gmra.mxu0 %v69
    %v190 = vpop.f32.mrf.mxu0
    %v191 = vadd.f32 %v53, %v190
    %v192 = vpop.f32.mrf.mxu0
    %193 = vmatprep.mubr.f32.mxu0 0.0
    %194 = vmatmul.mubr.f32.gmra.mxu0 %v72
    %v195 = vpop.f32.mrf.mxu0
    %v196 = vadd.f32 %v53, %v195
    %v197 = vpop.f32.mrf.mxu0
    %198 = vmatprep.mubr.f32.mxu0 0.0
    %199 = vmatmul.mubr.f32.gmra.mxu0 %v75
    %v200 = vpop.f32.mrf.mxu0
    %v201 = vadd.f32 %v53, %v200
    %v202 = vpop.f32.mrf.mxu0
    %203 = vmatprep.mubr.f32.mxu0 0.0
    %204 = vmatmul.mubr.f32.gmra.mxu0 %v78
    %v205 = vpop.f32.mrf.mxu0
    %v206 = vadd.f32 %v53, %v205
    %v207 = vpop.f32.mrf.mxu0
    %208 = vmatprep.mubr.f32.mxu0 0.0
    %209 = vmatmul.mubr.f32.gmra.mxu0 %v81
    %v210 = vpop.f32.mrf.mxu0
    %v211 = vadd.f32 %v53, %v210
    %v212 = vpop.f32.mrf.mxu0
    %213 = vmatprep.mubr.f32.mxu0 0.0
    %214 = vmatmul.mubr.f32.gmra.mxu0 %v84
    %v215 = vpop.f32.mrf.mxu0
    %v216 = vadd.f32 %v53, %v215
    %v217 = vpop.f32.mrf.mxu0
    %218 = vmatprep.mubr.f32.mxu0 0.0
    %219 = vmatmul.mubr.f32.gmra.mxu0 %v87
    %v220 = vpop.f32.mrf.mxu0
    %v221 = vadd.f32 %v53, %v220
    %v222 = vpop.f32.mrf.mxu0
    %223 = vmatprep.mubr.f32.mxu0 0.0
    %224 = vmatmul.mubr.f32.gmra.mxu0 %v90
    %v225 = vpop.f32.mrf.mxu0
    %v226 = vadd.f32 %v53, %v225
    %v227 = vpop.f32.mrf.mxu0
    %228 = vmatprep.mubr.f32.mxu0 0.0
    %229 = vmatmul.mubr.f32.gmra.mxu0 %v93
    %v230 = vpop.f32.mrf.mxu0
    %v231 = vadd.f32 %v53, %v230
    %v232 = vpop.f32.mrf.mxu0
    %233 = vmatprep.mubr.f32.mxu0 0.0
    %234 = vmatmul.mubr.f32.gmra.mxu0 %v96
    %v235 = vpop.f32.mrf.mxu0
    %v236 = vadd.f32 %v53, %v235
    %v237 = vpop.f32.mrf.mxu0
    %238 = vmatprep.mubr.f32.mxu0 0.0
    %239 = vmatmul.mubr.f32.gmra.mxu0 %v99
    %v240 = vpop.f32.mrf.mxu0
    %v241 = vadd.f32 %v53, %v240
    %v242 = vpop.f32.mrf.mxu0
    %243 = vmatprep.mubr.f32.mxu0 0.0
    %244 = vmatmul.mubr.f32.gmra.mxu0 %v102
    %v245 = vpop.f32.mrf.mxu0
    %v246 = vadd.f32 %v53, %v245
    %v247 = vpop.f32.mrf.mxu0
    %248 = vdwg.mxu0
    %v249 = vmax.f32 %v171, 0.0
    %v250 = vmax.f32 %v176, 0.0
    %v251 = vmax.f32 %v181, 0.0
    %v252 = vmax.f32 %v186, 0.0
    %v253 = vmax.f32 %v191, 0.0
    %v254 = vmax.f32 %v196, 0.0
    %v255 = vmax.f32 %v201, 0.0
    %v256 = vmax.f32 %v206, 0.0
    %v257 = vmax.f32 %v211, 0.0
    %v258 = vmax.f32 %v216, 0.0
    %v259 = vmax.f32 %v221, 0.0
    %v260 = vmax.f32 %v226, 0.0
    %v261 = vmax.f32 %v231, 0.0
    %v262 = vmax.f32 %v236, 0.0
    %v263 = vmax.f32 %v241, 0.0
    %v264 = vmax.f32 %v246, 0.0
    %v265 = vld [vmem:[%s3] sm:$0xff]
    %v266 = vld [vmem:[%s3 + $0x8] sm:$0xff]
    %v267 = vld [vmem:[%s3 + $0x10] sm:$0xff]
    %v268 = vld [vmem:[%s3 + $0x18] sm:$0xff]
    %v269 = vld [vmem:[%s3 + $0x20] sm:$0xff]
    %v270 = vld [vmem:[%s3 + $0x28] sm:$0xff]
    %v271 = vld [vmem:[%s3 + $0x30] sm:$0xff]
    %v272 = vld [vmem:[%s3 + $0x38] sm:$0xff]
    %v273 = vld [vmem:[%s3 + $0x40] sm:$0xff]
    %v274 = vld [vmem:[%s3 + $0x48] sm:$0xff]
    %v275 = vld [vmem:[%s3 + $0x50] sm:$0xff]
    %v276 = vld [vmem:[%s3 + $0x58] sm:$0xff]
    %v277 = vld [vmem:[%s3 + $0x60] sm:$0xff]
    %v278 = vld [vmem:[%s3 + $0x68] sm:$0xff]
    %v279 = vld [vmem:[%s3 + $0x70] sm:$0xff]
    %v280 = vld [vmem:[%s3 + $0x78] sm:$0xff]
    %v281 = vld [vmem:[%s4] sm:$0x1]
    %v283 = vlaneseq
    %v284 = vshrl.u32 %v283, 7
    %v285 = vsub.s32 0, %v284
    %v286 = vrot.slane %v281, %v285
    %288 = vmatprep.subr.mxu0 0.0
    %289 = vmatpush1.msra.mxu0 %v280
    %290 = vmatprep.subr.mxu0 0.0
    %291 = vmatpush1.msra.mxu0 %v279
    %292 = vmatprep.subr.mxu0 0.0
    %293 = vmatpush1.msra.mxu0 %v278
    %294 = vmatprep.subr.mxu0 0.0
    %295 = vmatpush1.msra.mxu0 %v277
    %296 = vmatprep.subr.mxu0 0.0
    %297 = vmatpush1.msra.mxu0 %v276
    %298 = vmatprep.subr.mxu0 0.0
    %299 = vmatpush1.msra.mxu0 %v275
    %300 = vmatprep.subr.mxu0 0.0
    %301 = vmatpush1.msra.mxu0 %v274
    %302 = vmatprep.subr.mxu0 0.0
    %303 = vmatpush1.msra.mxu0 %v273
    %304 = vmatprep.subr.mxu0 0.0
    %305 = vmatpush1.msra.mxu0 %v272
    %306 = vmatprep.subr.mxu0 0.0
    %307 = vmatpush1.msra.mxu0 %v271
    %308 = vmatprep.subr.mxu0 0.0
    %309 = vmatpush1.msra.mxu0 %v270
    %310 = vmatprep.subr.mxu0 0.0
    %311 = vmatpush1.msra.mxu0 %v269
    %312 = vmatprep.subr.mxu0 0.0
    %313 = vmatpush1.msra.mxu0 %v268
    %314 = vmatprep.subr.mxu0 0.0
    %315 = vmatpush1.msra.mxu0 %v267
    %316 = vmatprep.subr.mxu0 0.0
    %317 = vmatpush1.msra.mxu0 %v266
    %318 = vmatprep.subr.mxu0 0.0
    %319 = vmatpush1.msra.mxu0 %v265
    %320 = vmatprep.subr.mxu0 0.0
    %321 = vmatpush2.msra.mxu0 0.0
    %322 = vmatprep.subr.mxu0 0.0
    %323 = vmatpush2.msra.mxu0 0.0
    %324 = vmatprep.subr.mxu0 0.0
    %325 = vmatpush2.msra.mxu0 0.0
    %326 = vmatprep.subr.mxu0 0.0
    %327 = vmatpush2.msra.mxu0 0.0
    %328 = vmatprep.subr.mxu0 0.0
    %329 = vmatpush2.msra.mxu0 0.0
    %330 = vmatprep.subr.mxu0 0.0
    %331 = vmatpush2.msra.mxu0 0.0
    %332 = vmatprep.subr.mxu0 0.0
    %333 = vmatpush2.msra.mxu0 0.0
    %334 = vmatprep.subr.mxu0 0.0
    %335 = vmatpush2.msra.mxu0 0.0
    %336 = vmatprep.subr.mxu0 0.0
    %337 = vmatpush2.msra.mxu0 0.0
    %338 = vmatprep.subr.mxu0 0.0
    %339 = vmatpush2.msra.mxu0 0.0
    %340 = vmatprep.subr.mxu0 0.0
    %341 = vmatpush2.msra.mxu0 0.0
    %342 = vmatprep.subr.mxu0 0.0
    %343 = vmatpush2.msra.mxu0 0.0
    %344 = vmatprep.subr.mxu0 0.0
    %345 = vmatpush2.msra.mxu0 0.0
    %346 = vmatprep.subr.mxu0 0.0
    %347 = vmatpush2.msra.mxu0 0.0
    %348 = vmatprep.subr.mxu0 0.0
    %349 = vmatpush2.msra.mxu0 0.0
    %350 = vmatprep.subr.mxu0 0.0
    %351 = vmatpush2.msra.mxu0 0.0
    %352 = vmatprep.mubr.f32.mxu0 0.0
    %353 = vmatmul.mubr.f32.gmra.mxu0 %v249
    %v354 = vpop.f32.mrf.mxu0
    %v355 = vadd.f32 %v286, %v354
    %v356 = vpop.f32.mrf.mxu0
    %357 = vmatprep.mubr.f32.mxu0 0.0
    %358 = vmatmul.mubr.f32.gmra.mxu0 %v250
    %v359 = vpop.f32.mrf.mxu0
    %v360 = vadd.f32 %v286, %v359
    %v361 = vpop.f32.mrf.mxu0
    %362 = vmatprep.mubr.f32.mxu0 0.0
    %363 = vmatmul.mubr.f32.gmra.mxu0 %v251
    %v364 = vpop.f32.mrf.mxu0
    %v365 = vadd.f32 %v286, %v364
    %v366 = vpop.f32.mrf.mxu0
    %367 = vmatprep.mubr.f32.mxu0 0.0
    %368 = vmatmul.mubr.f32.gmra.mxu0 %v252
    %v369 = vpop.f32.mrf.mxu0
    %v370 = vadd.f32 %v286, %v369
    %v371 = vpop.f32.mrf.mxu0
    %372 = vmatprep.mubr.f32.mxu0 0.0
    %373 = vmatmul.mubr.f32.gmra.mxu0 %v253
    %v374 = vpop.f32.mrf.mxu0
    %v375 = vadd.f32 %v286, %v374
    %v376 = vpop.f32.mrf.mxu0
    %377 = vmatprep.mubr.f32.mxu0 0.0
    %378 = vmatmul.mubr.f32.gmra.mxu0 %v254
    %v379 = vpop.f32.mrf.mxu0
    %v380 = vadd.f32 %v286, %v379
    %v381 = vpop.f32.mrf.mxu0
    %382 = vmatprep.mubr.f32.mxu0 0.0
    %383 = vmatmul.mubr.f32.gmra.mxu0 %v255
    %v384 = vpop.f32.mrf.mxu0
    %v385 = vadd.f32 %v286, %v384
    %v386 = vpop.f32.mrf.mxu0
    %387 = vmatprep.mubr.f32.mxu0 0.0
    %388 = vmatmul.mubr.f32.gmra.mxu0 %v256
    %v389 = vpop.f32.mrf.mxu0
    %v390 = vadd.f32 %v286, %v389
    %v391 = vpop.f32.mrf.mxu0
    %392 = vmatprep.mubr.f32.mxu0 0.0
    %393 = vmatmul.mubr.f32.gmra.mxu0 %v257
    %v394 = vpop.f32.mrf.mxu0
    %v395 = vadd.f32 %v286, %v394
    %v396 = vpop.f32.mrf.mxu0
    %397 = vmatprep.mubr.f32.mxu0 0.0
    %398 = vmatmul.mubr.f32.gmra.mxu0 %v258
    %v399 = vpop.f32.mrf.mxu0
    %v400 = vadd.f32 %v286, %v399
    %v401 = vpop.f32.mrf.mxu0
    %402 = vmatprep.mubr.f32.mxu0 0.0
    %403 = vmatmul.mubr.f32.gmra.mxu0 %v259
    %v404 = vpop.f32.mrf.mxu0
    %v405 = vadd.f32 %v286, %v404
    %v406 = vpop.f32.mrf.mxu0
    %407 = vmatprep.mubr.f32.mxu0 0.0
    %408 = vmatmul.mubr.f32.gmra.mxu0 %v260
    %v409 = vpop.f32.mrf.mxu0
    %v410 = vadd.f32 %v286, %v409
    %v411 = vpop.f32.mrf.mxu0
    %412 = vmatprep.mubr.f32.mxu0 0.0
    %413 = vmatmul.mubr.f32.gmra.mxu0 %v261
    %v414 = vpop.f32.mrf.mxu0
    %v415 = vadd.f32 %v286, %v414
    %v416 = vpop.f32.mrf.mxu0
    %417 = vmatprep.mubr.f32.mxu0 0.0
    %418 = vmatmul.mubr.f32.gmra.mxu0 %v262
    %v419 = vpop.f32.mrf.mxu0
    %v420 = vadd.f32 %v286, %v419
    %v421 = vpop.f32.mrf.mxu0
    %422 = vmatprep.mubr.f32.mxu0 0.0
    %423 = vmatmul.mubr.f32.gmra.mxu0 %v263
    %v424 = vpop.f32.mrf.mxu0
    %v425 = vadd.f32 %v286, %v424
    %v426 = vpop.f32.mrf.mxu0
    %427 = vmatprep.mubr.f32.mxu0 0.0
    %428 = vmatmul.mubr.f32.gmra.mxu0 %v264
    %v429 = vpop.f32.mrf.mxu0
    %v430 = vadd.f32 %v286, %v429
    %v431 = vpop.f32.mrf.mxu0
    %432 = vdwg.mxu0
    %v433 = vmax.f32 %v355, 0.0
    %v434 = vmax.f32 %v360, 0.0
    %v435 = vmax.f32 %v365, 0.0
    %v436 = vmax.f32 %v370, 0.0
    %v437 = vmax.f32 %v375, 0.0
    %v438 = vmax.f32 %v380, 0.0
    %v439 = vmax.f32 %v385, 0.0
    %v440 = vmax.f32 %v390, 0.0
    %v441 = vmax.f32 %v395, 0.0
    %v442 = vmax.f32 %v400, 0.0
    %v443 = vmax.f32 %v405, 0.0
    %v444 = vmax.f32 %v410, 0.0
    %v445 = vmax.f32 %v415, 0.0
    %v446 = vmax.f32 %v420, 0.0
    %v447 = vmax.f32 %v425, 0.0
    %v448 = vmax.f32 %v430, 0.0
    %v449 = vld [vmem:[%s5] sm:$0x1]
    %v451 = vlaneseq
    %v452 = vshrl.u32 %v451, 7
    %v453 = vsub.s32 0, %v452
    %v454 = vrot.slane %v449, %v453
    %v456 = vmul.f32 %v433, %v454
    %v457 = vmul.f32 %v434, %v454
    %v458 = vmul.f32 %v435, %v454
    %v459 = vmul.f32 %v436, %v454
    %v460 = vmul.f32 %v437, %v454
    %v461 = vmul.f32 %v438, %v454
    %v462 = vmul.f32 %v439, %v454
    %v463 = vmul.f32 %v440, %v454
    %v464 = vmul.f32 %v441, %v454
    %v465 = vmul.f32 %v442, %v454
    %v466 = vmul.f32 %v443, %v454
    %v467 = vmul.f32 %v444, %v454
    %v468 = vmul.f32 %v445, %v454
    %v469 = vmul.f32 %v446, %v454
    %v470 = vmul.f32 %v447, %v454
    %v471 = vmul.f32 %v448, %v454
    %472 = vadd.xlane.f32.xlu0 %v456
    %v473 = vpop.xlane.xlu0 %472
    %474 = vadd.xlane.f32.xlu0 %v457
    %v475 = vpop.xlane.xlu0 %474
    %476 = vadd.xlane.f32.xlu0 %v458
    %v477 = vpop.xlane.xlu0 %476
    %478 = vadd.xlane.f32.xlu0 %v459
    %v479 = vpop.xlane.xlu0 %478
    %480 = vadd.xlane.f32.xlu0 %v460
    %v481 = vpop.xlane.xlu0 %480
    %482 = vadd.xlane.f32.xlu0 %v461
    %v483 = vpop.xlane.xlu0 %482
    %484 = vadd.xlane.f32.xlu0 %v462
    %v485 = vpop.xlane.xlu0 %484
    %486 = vadd.xlane.f32.xlu0 %v463
    %v487 = vpop.xlane.xlu0 %486
    %488 = vadd.xlane.f32.xlu0 %v464
    %v489 = vpop.xlane.xlu0 %488
    %490 = vadd.xlane.f32.xlu0 %v465
    %v491 = vpop.xlane.xlu0 %490
    %492 = vadd.xlane.f32.xlu0 %v466
    %v493 = vpop.xlane.xlu0 %492
    %494 = vadd.xlane.f32.xlu0 %v467
    %v495 = vpop.xlane.xlu0 %494
    %496 = vadd.xlane.f32.xlu0 %v468
    %v497 = vpop.xlane.xlu0 %496
    %498 = vadd.xlane.f32.xlu0 %v469
    %v499 = vpop.xlane.xlu0 %498
    %500 = vadd.xlane.f32.xlu0 %v470
    %v501 = vpop.xlane.xlu0 %500
    %502 = vadd.xlane.f32.xlu0 %v471
    %v503 = vpop.xlane.xlu0 %502
    %s504 = sld [smem:[#allocation2]]
    %v505 = vstv %s504
    %v506 = vadd.f32 %v473, %v505
    %v507 = vadd.f32 %v475, %v505
    %v508 = vadd.f32 %v477, %v505
    %v509 = vadd.f32 %v479, %v505
    %v510 = vadd.f32 %v481, %v505
    %v511 = vadd.f32 %v483, %v505
    %v512 = vadd.f32 %v485, %v505
    %v513 = vadd.f32 %v487, %v505
    %v514 = vadd.f32 %v489, %v505
    %v515 = vadd.f32 %v491, %v505
    %v516 = vadd.f32 %v493, %v505
    %v517 = vadd.f32 %v495, %v505
    %v518 = vadd.f32 %v497, %v505
    %v519 = vadd.f32 %v499, %v505
    %v520 = vadd.f32 %v501, %v505
    %v521 = vadd.f32 %v503, %v505
    %v538 = vlaneseq
    %v539 = vand.u32 %v538, 127
    %v540 = vlaneseq
    %v541 = vshrl.u32 %v540, 7
    %v542 = vsub.s32 %v539, %v541
    %v543 = vrot.slane %v506, %v542
    %v544 = vadd.s32 %v539, 4294967288
    %v545 = vlaneseq
    %v546 = vshrl.u32 %v545, 7
    %v547 = vsub.s32 %v544, %v546
    %v548 = vrot.slane %v507, %v547
    %vm549 = vcmask 130112
    %v550 = vsel %vm549, %v548, %v543
    %v551 = vadd.s32 %v539, 4294967280
    %v552 = vlaneseq
    %v553 = vshrl.u32 %v552, 7
    %v554 = vsub.s32 %v551, %v553
    %v555 = vrot.slane %v508, %v554
    %vm556 = vcmask 195712
    %v557 = vsel %vm556, %v555, %v550
    %v558 = vadd.s32 %v539, 4294967272
    %v559 = vlaneseq
    %v560 = vshrl.u32 %v559, 7
    %v561 = vsub.s32 %v558, %v560
    %v562 = vrot.slane %v509, %v561
    %vm563 = vcmask 261312
    %v564 = vsel %vm563, %v562, %v557
    %v565 = vadd.s32 %v539, 4294967264
    %v566 = vlaneseq
    %v567 = vshrl.u32 %v566, 7
    %v568 = vsub.s32 %v565, %v567
    %v569 = vrot.slane %v510, %v568
    %vm570 = vcmask 326912
    %v571 = vsel %vm570, %v569, %v564
    %v572 = vadd.s32 %v539, 4294967256
    %v573 = vlaneseq
    %v574 = vshrl.u32 %v573, 7
    %v575 = vsub.s32 %v572, %v574
    %v576 = vrot.slane %v511, %v575
    %vm577 = vcmask 392512
    %v578 = vsel %vm577, %v576, %v571
    %v579 = vadd.s32 %v539, 4294967248
    %v580 = vlaneseq
    %v581 = vshrl.u32 %v580, 7
    %v582 = vsub.s32 %v579, %v581
    %v583 = vrot.slane %v512, %v582
    %vm584 = vcmask 458112
    %v585 = vsel %vm584, %v583, %v578
    %v586 = vadd.s32 %v539, 4294967240
    %v587 = vlaneseq
    %v588 = vshrl.u32 %v587, 7
    %v589 = vsub.s32 %v586, %v588
    %v590 = vrot.slane %v513, %v589
    %vm591 = vcmask 523712
    %v592 = vsel %vm591, %v590, %v585
    %v593 = vadd.s32 %v539, 4294967232
    %v594 = vlaneseq
    %v595 = vshrl.u32 %v594, 7
    %v596 = vsub.s32 %v593, %v595
    %v597 = vrot.slane %v514, %v596
    %vm598 = vcmask 589312
    %v599 = vsel %vm598, %v597, %v592
    %v600 = vadd.s32 %v539, 4294967224
    %v601 = vlaneseq
    %v602 = vshrl.u32 %v601, 7
    %v603 = vsub.s32 %v600, %v602
    %v604 = vrot.slane %v515, %v603
    %vm605 = vcmask 654912
    %v606 = vsel %vm605, %v604, %v599
    %v607 = vadd.s32 %v539, 4294967216
    %v608 = vlaneseq
    %v609 = vshrl.u32 %v608, 7
    %v610 = vsub.s32 %v607, %v609
    %v611 = vrot.slane %v516, %v610
    %vm612 = vcmask 720512
    %v613 = vsel %vm612, %v611, %v606
    %v614 = vadd.s32 %v539, 4294967208
    %v615 = vlaneseq
    %v616 = vshrl.u32 %v615, 7
    %v617 = vsub.s32 %v614, %v616
    %v618 = vrot.slane %v517, %v617
    %vm619 = vcmask 786112
    %v620 = vsel %vm619, %v618, %v613
    %v621 = vadd.s32 %v539, 4294967200
    %v622 = vlaneseq
    %v623 = vshrl.u32 %v622, 7
    %v624 = vsub.s32 %v621, %v623
    %v625 = vrot.slane %v518, %v624
    %vm626 = vcmask 851712
    %v627 = vsel %vm626, %v625, %v620
    %v628 = vadd.s32 %v539, 4294967192
    %v629 = vlaneseq
    %v630 = vshrl.u32 %v629, 7
    %v631 = vsub.s32 %v628, %v630
    %v632 = vrot.slane %v519, %v631
    %vm633 = vcmask 917312
    %v634 = vsel %vm633, %v632, %v627
    %v635 = vadd.s32 %v539, 4294967184
    %v636 = vlaneseq
    %v637 = vshrl.u32 %v636, 7
    %v638 = vsub.s32 %v635, %v637
    %v639 = vrot.slane %v520, %v638
    %vm640 = vcmask 982912
    %v641 = vsel %vm640, %v639, %v634
    %v642 = vadd.s32 %v539, 4294967176
    %v643 = vlaneseq
    %v644 = vshrl.u32 %v643, 7
    %v645 = vsub.s32 %v642, %v644
    %v646 = vrot.slane %v521, %v645
    %vm647 = vcmask 1048512
    %v648 = vsel %vm647, %v646, %v641
    %650 = vst [vmem:[#allocation3] sm:$0x1] %v648
    // Predicated region
    $region30: #{tpu_custom_call.1} parent=1 // pred_check
      _
    $region31: #{tpu_custom_call.1} parent=1 // pred_check_branch
      %652 = sbr.rel (0) target = $region33
    $region32: #{tpu_custom_call.1} parent=1 // pred_region
      %s654 = ssub.s32 16, 16
      %655 = vsyncadd [#allocation4], %s654
      %s657 = sshll.u32 [#allocation3], 4
      %s658 = int_to_ptr.vmem [resolvable:$true] %s657
      %660 = dma.vmem_to_hbm [thread:$0]  %s658, 16, %s7, [#allocation4]
    $region33: #{tpu_custom_call.1} parent=1 // pred_fallthru
      _
    // Predicated region
    $region34: #{tpu_custom_call.1} parent=1 // pred_check
      _
    $region35: #{tpu_custom_call.1} parent=1 // pred_check_branch
      %662 = sbr.rel (0) target = $region37
    $region36: #{tpu_custom_call.1} parent=1 // pred_region
      %663 = dma.done [#allocation4], 16
    $region37: #{tpu_custom_call.1} parent=1 // pred_fallthru
      _
    %664 = vsyncpa [#allocation4], 1

</llo_original>
